<compile_context>
chip_gen: v5e
topology: v5e:2x2
jax: 0.10.0
libtpu: 0.0.40
codegen_flags: <defaults>
</compile_context>

<pallas_src>
import jax
import jax.numpy as jnp
from jax.experimental import pallas as pl
from jax.experimental.pallas import tpu as pltpu

Q1 = 0.1
Q9 = 1.0 - Q1
ALPHA = 0.8
BETA = 0.1

LANES = 128
MAX_BLOCK_ROWS = 8192            # (8192, 128) f32 = 4 MiB per input per buffer
SMALL_ROWS = 64                  # below this, kernel launch cost dominates
VMEM_LIMIT_BYTES = 40 * 1024 * 1024


def _detect_num_tensorcores():
    """Use the 2-way core split only on chips with 2 TensorCores (v7x)."""
    try:
        kind = jax.devices()[0].device_kind.lower()
    except Exception:
        return 1
    return 2 if "v7" in kind else 1


def _elem_terms(o, t, v):
    # Per-element HybridLoss contribution:
    #   loss10 + loss90 = 0.5*(|d+v| + |d-v|) - (Q9-Q1)*v = max(|d|,|v|) - 0.8*v
    #   + ALPHA * (o-t)^2 + BETA * |o - v|
    d = t - o
    return (jnp.maximum(jnp.abs(d), jnp.abs(v))
            - (Q9 - Q1) * v
            + ALPHA * (d * d)
            + BETA * jnp.abs(o - v))


def _make_kernel(block_rows, rows, bpc, first_masked, acc_rows, needs_mask):
    groups = block_rows // 8 if acc_rows == 8 else None

    def partial_sum(x):
        if acc_rows == 8:
            # Pure vreg adds; defer the 8->1 sublane reduce to JAX at the end.
            return x.reshape(groups, 8, LANES).sum(axis=0)
        return jnp.sum(x, axis=0, keepdims=True)

    def kernel(o_ref, t_ref, v_ref, out_ref, acc_ref):
        c = pl.program_id(0)
        i = pl.program_id(1)

        @pl.when(i == 0)
        def _():
            acc_ref[...] = jnp.zeros_like(acc_ref)

        o = o_ref[...].astype(jnp.float32)
        t = t_ref[...].astype(jnp.float32)
        v = v_ref[...].astype(jnp.float32)
        combined = _elem_terms(o, t, v)

        if needs_mask:
            bid = c * bpc + i

            @pl.when(bid < first_masked)
            def _():
                acc_ref[...] += partial_sum(combined)

            @pl.when(bid >= first_masked)
            def _():
                # Lane-dense row ids; keep this a *select* (not multiply) so
                # garbage in padded / over-issued rows cannot leak NaN/Inf.
                row0 = bid * block_rows
                row_ids = row0 + jax.lax.broadcasted_iota(
                    jnp.int32, (block_rows, LANES), 0)
                acc_ref[...] += partial_sum(
                    jnp.where(row_ids < rows, combined, 0.0))
        else:
            acc_ref[...] += partial_sum(combined)

        @pl.when(i == pl.num_programs(1) - 1)
        def _():
            out_ref[...] = acc_ref[...]

    return kernel


def hybrid_loss(output_o, target_o, var_o, *,
                max_block_rows=MAX_BLOCK_ROWS,
                small_rows_threshold=SMALL_ROWS):
    assert output_o.shape == target_o.shape == var_o.shape
    n_elem = output_o.size
    assert n_elem > 0

    rows = n_elem // LANES
    main = rows * LANES
    rem = n_elem - main

    flat_o = jnp.ravel(output_o)                 # free for contiguous arrays
    flat_t = jnp.ravel(target_o)
    flat_v = jnp.ravel(var_o)

    # Tiny inputs: XLA's fused reduction beats the pallas_call fixed cost.
    if rows <= small_rows_threshold:
        return jnp.sum(_elem_terms(flat_o.astype(jnp.float32),
                                   flat_t.astype(jnp.float32),
                                   flat_v.astype(jnp.float32))) / jnp.float32(n_elem)

    def as_2d(flat):
        if rem:
            flat = jax.lax.slice(flat, (0,), (main,))
        return flat.reshape(rows, LANES)         # free reshape

    o2, t2, v2 = as_2d(flat_o), as_2d(flat_t), as_2d(flat_v)

    if rows <= max_block_rows:
        block_rows = rows                        # full dim -> legal block
        num_blocks = 1
    else:
        block_rows = max_block_rows
        num_blocks = pl.cdiv(rows, block_rows)

    # (8,128)-aligned accumulator whenever the block allows it.
    acc_rows = 8 if block_rows % 8 == 0 else 1
    detected_cores = _detect_num_tensorcores()

    def run(num_cores):
        bpc = pl.cdiv(num_blocks, num_cores)     # blocks per core
        total_issued = num_cores * bpc
        first_masked = rows // block_rows        # first block needing a mask
        needs_mask = total_issued > first_masked
        last_block = num_blocks - 1

        def in_map(c, i):
            # Clamp so every DMA stays in bounds; over-issued blocks re-read
            # the last block and are fully masked in the kernel.
            return (jnp.minimum(c * bpc + i, last_block), 0)

        in_spec = pl.BlockSpec((block_rows, LANES), in_map)
        out_spec = pl.BlockSpec((acc_rows, LANES), lambda c, i: (c, 0))

        if num_cores > 1:
            semantics = (pltpu.CORE_PARALLEL, pltpu.ARBITRARY)
        else:
            semantics = (pltpu.ARBITRARY, pltpu.ARBITRARY)

        kernel = _make_kernel(block_rows, rows, bpc, first_masked,
                              acc_rows, needs_mask)

        return pl.pallas_call(
            kernel,
            out_shape=jax.ShapeDtypeStruct((num_cores * acc_rows, LANES),
                                           jnp.float32),
            grid_spec=pltpu.PrefetchScalarGridSpec(
                num_scalar_prefetch=0,
                grid=(num_cores, bpc),
                in_specs=[in_spec, in_spec, in_spec],
                out_specs=out_spec,
                scratch_shapes=[pltpu.VMEM((acc_rows, LANES), jnp.float32)],
            ),
            compiler_params=pltpu.CompilerParams(
                dimension_semantics=semantics,
                vmem_limit_bytes=VMEM_LIMIT_BYTES,
            ),
        )(o2, t2, v2)

    num_cores = min(detected_cores, num_blocks)
    try:
        partial = run(num_cores)
    except Exception:
        if num_cores > 1:
            partial = run(1)   # safety net if core-parallel lowering is unavailable
        else:
            raise

    total = jnp.sum(partial)

    if rem:
        # <=127-element remainder handled directly in JAX (no full-array pad).
        to = jax.lax.slice(flat_o, (main,), (n_elem,)).astype(jnp.float32)
        tt = jax.lax.slice(flat_t, (main,), (n_elem,)).astype(jnp.float32)
        tv = jax.lax.slice(flat_v, (main,), (n_elem,)).astype(jnp.float32)
        total = total + jnp.sum(_elem_terms(to, tt, tv))

    return total / jnp.float32(n_elem)


def hybrid_loss_ref(output_o, target_o, var_o):
    # Pure-JAX reference matching the PyTorch module exactly.
    o = output_o.astype(jnp.float32)
    t = target_o.astype(jnp.float32)
    v = var_o.astype(jnp.float32)
    q_10 = t - (o - v)
    q_90 = t - (o + v)
    loss_10 = jnp.mean(jnp.maximum(Q1 * q_10, (Q1 - 1.0) * q_10))
    loss_90 = jnp.mean(jnp.maximum(Q9 * q_90, (Q9 - 1.0) * q_90))
    pinball = loss_10 + loss_90
    mse = jnp.mean((o - t) ** 2)
    bias = BETA * jnp.mean(jnp.abs(o - v))
    return pinball + ALPHA * mse + bias


if __name__ == "__main__":
    key = jax.random.PRNGKey(0)

    def make_inputs(shape, k):
        k1, k2, k3 = jax.random.split(k, 3)
        o = jax.random.normal(k1, shape, dtype=jnp.float32)
        t = jax.random.normal(k2, shape, dtype=jnp.float32)
        v = jnp.abs(jax.random.normal(k3, shape, dtype=jnp.float32))
        return o, t, v

    k0, k1, k2, k3 = jax.random.split(key, 4)

    # 1) Main case: lane-aligned, single block, kernel fast path.
    o, t, v = make_inputs((2, 4, 64, 64), k0)          # 16384 elems -> 128 rows
    loss = jax.block_until_ready(hybrid_loss(o, t, v))
    ref = jax.block_until_ready(hybrid_loss_ref(o, t, v))
    assert jnp.allclose(loss, ref, rtol=1e-5, atol=1e-5), (loss, ref)

    # 2) Multi-block + masked tail (+ 2-way core split on v7x); shrunk block.
    o, t, v = make_inputs((2, 4, 40, 32), k1)          # 10240 elems -> 80 rows
    loss = jax.block_until_ready(hybrid_loss(o, t, v, max_block_rows=32))
    ref = jax.block_until_ready(hybrid_loss_ref(o, t, v))
    assert jnp.allclose(loss, ref, rtol=1e-5, atol=1e-5), (loss, ref)

    # 3) numel % 128 != 0: kernel on the aligned prefix, JAX remainder tail.
    o, t, v = make_inputs((2, 4, 33, 41), k2)          # 10824 elems -> 84 rows + 72
    loss = jax.block_until_ready(hybrid_loss(o, t, v))
    ref = jax.block_until_ready(hybrid_loss_ref(o, t, v))
    assert jnp.allclose(loss, ref, rtol=1e-5, atol=1e-5), (loss, ref)

    # 4) Tiny input: pure-JAX short-circuit path.
    o, t, v = make_inputs((2, 4, 16, 16), k3)
    loss = jax.block_until_ready(hybrid_loss(o, t, v))
    ref = jax.block_until_ready(hybrid_loss_ref(o, t, v))
    assert jnp.allclose(loss, ref, rtol=1e-5, atol=1e-5), (loss, ref)

    print("KERNEL_OK")
</pallas_src>

<mosaic_0001>
module attributes {stable_mosaic.version = 11 : i64} {
  func.func @kernel(%arg0: i32, %arg1: i32, %arg2: memref<256x128xf32, #tpu.memory_space<vmem>>, %arg3: memref<256x128xf32, #tpu.memory_space<vmem>>, %arg4: memref<256x128xf32, #tpu.memory_space<vmem>>, %arg5: memref<8x128xf32, #tpu.memory_space<vmem>>, %arg6: memref<8x128xf32, #tpu.memory_space<vmem>>) attributes {dimension_semantics = [#tpu.dimension_semantics<arbitrary>, #tpu.dimension_semantics<arbitrary>], iteration_bounds = array<i64: 1, 1>, scalar_prefetch = 0 : i64, scratch_operands = 1 : i64, tpu.core_type = #tpu.core_type<tc>, window_params = [{transform_indices = @transform_0, window_bounds = array<i64: 256, 128>}, {transform_indices = @transform_1, window_bounds = array<i64: 256, 128>}, {transform_indices = @transform_2, window_bounds = array<i64: 256, 128>}, {transform_indices = @transform_3, window_bounds = array<i64: 8, 128>}]} {
    %c0_i32 = arith.constant 0 : i32
    %0 = arith.cmpi eq, %arg1, %c0_i32 : i32
    %1 = arith.extui %0 : i1 to i32
    %c0_i32_0 = arith.constant 0 : i32
    %2 = arith.cmpi ne, %1, %c0_i32_0 : i32
    scf.if %2 {
      %cst_15 = arith.constant 0.000000e+00 : f32
      %30 = vector.broadcast %cst_15 : f32 to vector<8x128xf32>
      %c0_16 = arith.constant 0 : index
      %c0_17 = arith.constant 0 : index
      %31 = vector.load %arg6[%c0_16, %c0_17] : memref<8x128xf32, #tpu.memory_space<vmem>>, vector<8x128xf32>
      tpu.vector_store %arg6[%c0_16, %c0_17], %30 {strides = array<i32>} : memref<8x128xf32, #tpu.memory_space<vmem>>, vector<8x128xf32>,
    } else {
    }
    %c0 = arith.constant 0 : index
    %c0_1 = arith.constant 0 : index
    %3 = vector.load %arg2[%c0, %c0_1] : memref<256x128xf32, #tpu.memory_space<vmem>>, vector<256x128xf32>
    %c0_2 = arith.constant 0 : index
    %c0_3 = arith.constant 0 : index
    %4 = vector.load %arg3[%c0_2, %c0_3] : memref<256x128xf32, #tpu.memory_space<vmem>>, vector<256x128xf32>
    %c0_4 = arith.constant 0 : index
    %c0_5 = arith.constant 0 : index
    %5 = vector.load %arg4[%c0_4, %c0_5] : memref<256x128xf32, #tpu.memory_space<vmem>>, vector<256x128xf32>
    %6 = arith.subf %4, %3 : vector<256x128xf32>
    %7 = math.absf %6 : vector<256x128xf32>
    %8 = math.absf %5 : vector<256x128xf32>
    %9 = arith.maximumf %7, %8 : vector<256x128xf32>
    %cst = arith.constant 8.000000e-01 : f32
    %10 = vector.broadcast %cst : f32 to vector<256x128xf32>
    %11 = arith.mulf %10, %5 : vector<256x128xf32>
    %12 = arith.subf %9, %11 : vector<256x128xf32>
    %13 = arith.mulf %6, %6 : vector<256x128xf32>
    %cst_6 = arith.constant 8.000000e-01 : f32
    %14 = vector.broadcast %cst_6 : f32 to vector<256x128xf32>
    %15 = arith.mulf %14, %13 : vector<256x128xf32>
    %16 = arith.addf %12, %15 : vector<256x128xf32>
    %17 = arith.subf %3, %5 : vector<256x128xf32>
    %18 = math.absf %17 : vector<256x128xf32>
    %cst_7 = arith.constant 1.000000e-01 : f32
    %19 = vector.broadcast %cst_7 : f32 to vector<256x128xf32>
    %20 = arith.mulf %19, %18 : vector<256x128xf32>
    %21 = arith.addf %16, %20 : vector<256x128xf32>
    %c0_8 = arith.constant 0 : index
    %c0_9 = arith.constant 0 : index
    %22 = vector.load %arg6[%c0_8, %c0_9] : memref<8x128xf32, #tpu.memory_space<vmem>>, vector<8x128xf32>
    %23 = vector.shape_cast %21 : vector<256x128xf32> to vector<32x8x128xf32>
    %cst_10 = arith.constant dense<0.000000e+00> : vector<8x128xf32>
    %24 = vector.multi_reduction <add>, %23, %cst_10 [0] : vector<32x8x128xf32> to vector<8x128xf32>
    %25 = arith.addf %22, %24 : vector<8x128xf32>
    %c0_11 = arith.constant 0 : index
    %c0_12 = arith.constant 0 : index
    %26 = vector.load %arg6[%c0_11, %c0_12] : memref<8x128xf32, #tpu.memory_space<vmem>>, vector<8x128xf32>
    tpu.vector_store %arg6[%c0_11, %c0_12], %25 {strides = array<i32>} : memref<8x128xf32, #tpu.memory_space<vmem>>, vector<8x128xf32>,
    %c0_i32_13 = arith.constant 0 : i32
    %27 = arith.cmpi eq, %arg1, %c0_i32_13 : i32
    %28 = arith.extui %27 : i1 to i32
    %c0_i32_14 = arith.constant 0 : i32
    %29 = arith.cmpi ne, %28, %c0_i32_14 : i32
    scf.if %29 {
      %c0_15 = arith.constant 0 : index
      %c0_16 = arith.constant 0 : index
      %30 = vector.load %arg6[%c0_15, %c0_16] : memref<8x128xf32, #tpu.memory_space<vmem>>, vector<8x128xf32>
      %c0_17 = arith.constant 0 : index
      %c0_18 = arith.constant 0 : index
      %31 = vector.load %arg5[%c0_17, %c0_18] : memref<8x128xf32, #tpu.memory_space<vmem>>, vector<8x128xf32>
      tpu.vector_store %arg5[%c0_17, %c0_18], %30 {strides = array<i32>} : memref<8x128xf32, #tpu.memory_space<vmem>>, vector<8x128xf32>,
    } else {
    }
    return
  }
  func.func @transform_0(%arg0: i32, %arg1: i32) -> (i32, i32) {
    %c1_i32 = arith.constant 1 : i32
    %0 = arith.muli %arg0, %c1_i32 : i32
    %1 = arith.addi %0, %arg1 : i32
    %c0_i32 = arith.constant 0 : i32
    %2 = arith.minsi %1, %c0_i32 : i32
    %c0_i32_0 = arith.constant 0 : i32
    %c0_i32_1 = arith.constant 0 : i32
    return %2, %c0_i32_0 : i32, i32
  }
  func.func @transform_1(%arg0: i32, %arg1: i32) -> (i32, i32) {
    %c1_i32 = arith.constant 1 : i32
    %0 = arith.muli %arg0, %c1_i32 : i32
    %1 = arith.addi %0, %arg1 : i32
    %c0_i32 = arith.constant 0 : i32
    %2 = arith.minsi %1, %c0_i32 : i32
    %c0_i32_0 = arith.constant 0 : i32
    %c0_i32_1 = arith.constant 0 : i32
    return %2, %c0_i32_0 : i32, i32
  }
  func.func @transform_2(%arg0: i32, %arg1: i32) -> (i32, i32) {
    %c1_i32 = arith.constant 1 : i32
    %0 = arith.muli %arg0, %c1_i32 : i32
    %1 = arith.addi %0, %arg1 : i32
    %c0_i32 = arith.constant 0 : i32
    %2 = arith.minsi %1, %c0_i32 : i32
    %c0_i32_0 = arith.constant 0 : i32
    %c0_i32_1 = arith.constant 0 : i32
    return %2, %c0_i32_0 : i32, i32
  }
  func.func @transform_3(%arg0: i32, %arg1: i32) -> (i32, i32) {
    %c0_i32 = arith.constant 0 : i32
    %c0_i32_0 = arith.constant 0 : i32
    return %arg0, %c0_i32 : i32, i32
  }
}

</mosaic_0001>

<llo_original>
// kernel: tpu_custom_call.1
$region0: #{tpu_custom_call.1}
  #allocation0 [shape = 'u32[]', space=smem, size = 0x4, offset = 0x4, fixed_abs, tag = 'smem constant byte address 0x4 - core index']
  #allocation1 [shape = 'u32[72,128]{1,0:T(1,128)}', space=vmem, size = 0x9000, scoped, tag = 'internal scratch']
  #allocation2 [shape = 'f32[8,128]{1,0:T(8,128)}', space=vmem, size = 0x1000, scoped, tag = 'scratch operand']
  %s0 = inlined_call_operand.hbm [shape: f32[256,128], index: 0, kind: input, shape index: {}]
  %s1 = inlined_call_operand.hbm [shape: f32[256,128], index: 1, kind: input, shape index: {}]
  %s2 = inlined_call_operand.hbm [shape: f32[256,128], index: 2, kind: input, shape index: {}]
  %s3 = inlined_call_operand.hbm [shape: f32[8,128], index: 3, kind: output, shape index: {}]
  %s4 = sld [smem:[#allocation0]]
  $region42: #{tpu_custom_call.1} parent=0
    _
  %s6 = ssub.s32 1, %s4
  %s7 = scalar_select 0, %s6, %s4
  $region1: #{tpu_custom_call.1} parent=0
    #allocation3 [shape = 'u8[131072]{0}', space=vmem, size = 0x20000, scoped, tag = 'input window, operand 0, single buffered']
    #allocation4 [shape = 's32[1]{0}', space=sflag, size = 0x4, scoped, tag = 'scoped memory for tpu_custom_call.1']
    #allocation5 [shape = 's32[1]{0}', space=sflag, size = 0x4, scoped, tag = 'scoped memory for tpu_custom_call.1']
    #allocation6 [shape = 'u8[131072]{0}', space=vmem, size = 0x20000, scoped, tag = 'input window, operand 1, single buffered']
    #allocation7 [shape = 's32[1]{0}', space=sflag, size = 0x4, scoped, tag = 'scoped memory for tpu_custom_call.1']
    #allocation8 [shape = 'u8[131072]{0}', space=vmem, size = 0x20000, scoped, tag = 'input window, operand 2, single buffered']
    #allocation9 [shape = 'u8[4096]{0}', space=vmem, size = 0x1000, scoped, tag = 'output window, operand 0, single buffered']
    %8 = vsyncpa [#allocation4], 0
    %9 = vsyncpa [#allocation7], 0
    %10 = vsyncpa [#allocation5], 0
    // Predicated region
    $region2: #{tpu_custom_call.1} parent=1 // pred_check
      _
    $region3: #{tpu_custom_call.1} parent=1 // pred_check_branch
      %12 = sbr.rel (0) target = $region5
    $region4: #{tpu_custom_call.1} parent=1 // pred_region
      %s13 = sadd.s32 0, 0
      %p14 = scmp.lt.s32.totalorder %s13, 0
      %s15 = scalar_select %p14, %s13, 0
      %s16 = smul.u32 32, %s15
      %18 = vsyncadd [#allocation4], 0
      %s19 = smul.addr %s16, 8
      %s20 = scalar_lea.hbm %s0, %s19
      %s21 = sshll.u32 %s20, 4
      %s22 = int_to_ptr.hbm [resolvable:$true] %s21
      %s23 = sshll.u32 [#allocation3], 4
      %s24 = int_to_ptr.vmem [resolvable:$true] %s23
      %29 = dma.hbm_to_vmem [thread:$0]  %s22, 4096, %s24, [#allocation4], 128, 128, 8
    $region5: #{tpu_custom_call.1} parent=1 // pred_fallthru
      _
    // Predicated region
    $region6: #{tpu_custom_call.1} parent=1 // pred_check
      _
    $region7: #{tpu_custom_call.1} parent=1 // pred_check_branch
      %31 = sbr.rel (0) target = $region9
    $region8: #{tpu_custom_call.1} parent=1 // pred_region
      %s32 = sadd.s32 0, 0
      %p33 = scmp.lt.s32.totalorder %s32, 0
      %s34 = scalar_select %p33, %s32, 0
      %s35 = smul.u32 32, %s34
      %37 = vsyncadd [#allocation7], 0
      %s38 = smul.addr %s35, 8
      %s39 = scalar_lea.hbm %s1, %s38
      %s40 = sshll.u32 %s39, 4
      %s41 = int_to_ptr.hbm [resolvable:$true] %s40
      %s42 = sshll.u32 [#allocation6], 4
      %s43 = int_to_ptr.vmem [resolvable:$true] %s42
      %48 = dma.hbm_to_vmem [thread:$0]  %s41, 4096, %s43, [#allocation7], 128, 128, 8
    $region9: #{tpu_custom_call.1} parent=1 // pred_fallthru
      _
    // Predicated region
    $region10: #{tpu_custom_call.1} parent=1 // pred_check
      _
    $region11: #{tpu_custom_call.1} parent=1 // pred_check_branch
      %50 = sbr.rel (0) target = $region13
    $region12: #{tpu_custom_call.1} parent=1 // pred_region
      %s51 = sadd.s32 0, 0
      %p52 = scmp.lt.s32.totalorder %s51, 0
      %s53 = scalar_select %p52, %s51, 0
      %s54 = smul.u32 32, %s53
      %56 = vsyncadd [#allocation7], 0
      %s57 = smul.addr %s54, 8
      %s58 = scalar_lea.hbm %s2, %s57
      %s59 = sshll.u32 %s58, 4
      %s60 = int_to_ptr.hbm [resolvable:$true] %s59
      %s61 = sshll.u32 [#allocation8], 4
      %s62 = int_to_ptr.vmem [resolvable:$true] %s61
      %67 = dma.hbm_to_vmem [thread:$0]  %s60, 4096, %s62, [#allocation7], 128, 128, 8
    $region13: #{tpu_custom_call.1} parent=1 // pred_fallthru
      _
    // Predicated region
    $region14: #{tpu_custom_call.1} parent=1 // pred_check
      _
    $region15: #{tpu_custom_call.1} parent=1 // pred_check_branch
      %69 = sbr.rel (0) target = $region17
    $region16: #{tpu_custom_call.1} parent=1 // pred_region
      %71 = dma.done [#allocation4], 4096
    $region17: #{tpu_custom_call.1} parent=1 // pred_fallthru
      _
    // Predicated region
    $region18: #{tpu_custom_call.1} parent=1 // pred_check
      _
    $region19: #{tpu_custom_call.1} parent=1 // pred_check_branch
      %73 = sbr.rel (0) target = $region21
    $region20: #{tpu_custom_call.1} parent=1 // pred_region
      %75 = dma.done [#allocation7], 4096
    $region21: #{tpu_custom_call.1} parent=1 // pred_fallthru
      _
    // Predicated region
    $region22: #{tpu_custom_call.1} parent=1 // pred_check
      _
    $region23: #{tpu_custom_call.1} parent=1 // pred_check_branch
      %77 = sbr.rel (0) target = $region25
    $region24: #{tpu_custom_call.1} parent=1 // pred_region
      %79 = dma.done [#allocation7], 4096
    $region25: #{tpu_custom_call.1} parent=1 // pred_fallthru
      _
    %s80 = sadd.s32 0, 0
    %p81 = scmp.lt.s32.totalorder %s80, 0
    %s82 = scalar_select %p81, %s80, 0
    %s83 = smul.u32 32, %s82
    %s84 = sadd.s32 0, 0
    %p85 = scmp.lt.s32.totalorder %s84, 0
    %s86 = scalar_select %p85, %s84, 0
    %s87 = smul.u32 32, %s86
    %s88 = sadd.s32 0, 0
    %p89 = scmp.lt.s32.totalorder %s88, 0
    %s90 = scalar_select %p89, %s88, 0
    %s91 = smul.u32 32, %s90
    %p92 = scmp.eq.s32.totalorder 0, 0
    // Predicated region
    $region26: #{tpu_custom_call.1} parent=1 // pred_check
      %p93 = pneg %p92
    $region27: #{tpu_custom_call.1} parent=1 // pred_check_branch
      %95 = sbr.rel (%p93) target = $region29
    $region28: #{tpu_custom_call.1} parent=1 // pred_region
      %96 = vst [vmem:[#allocation2] sm:$0xff] 0.0
    $region29: #{tpu_custom_call.1} parent=1 // pred_fallthru
      _
    %v97 = vld [vmem:[#allocation3] sm:$0xff]
    %v98 = vld [vmem:[#allocation3 + $0x8] sm:$0xff]
    %v99 = vld [vmem:[#allocation3 + $0x10] sm:$0xff]
    %v100 = vld [vmem:[#allocation3 + $0x18] sm:$0xff]
    %v101 = vld [vmem:[#allocation3 + $0x20] sm:$0xff]
    %v102 = vld [vmem:[#allocation3 + $0x28] sm:$0xff]
    %v103 = vld [vmem:[#allocation3 + $0x30] sm:$0xff]
    %v104 = vld [vmem:[#allocation3 + $0x38] sm:$0xff]
    %v105 = vld [vmem:[#allocation3 + $0x40] sm:$0xff]
    %v106 = vld [vmem:[#allocation3 + $0x48] sm:$0xff]
    %v107 = vld [vmem:[#allocation3 + $0x50] sm:$0xff]
    %v108 = vld [vmem:[#allocation3 + $0x58] sm:$0xff]
    %v109 = vld [vmem:[#allocation3 + $0x60] sm:$0xff]
    %v110 = vld [vmem:[#allocation3 + $0x68] sm:$0xff]
    %v111 = vld [vmem:[#allocation3 + $0x70] sm:$0xff]
    %v112 = vld [vmem:[#allocation3 + $0x78] sm:$0xff]
    %v113 = vld [vmem:[#allocation3 + $0x80] sm:$0xff]
    %v114 = vld [vmem:[#allocation3 + $0x88] sm:$0xff]
    %v115 = vld [vmem:[#allocation3 + $0x90] sm:$0xff]
    %v116 = vld [vmem:[#allocation3 + $0x98] sm:$0xff]
    %v117 = vld [vmem:[#allocation3 + $0xa0] sm:$0xff]
    %v118 = vld [vmem:[#allocation3 + $0xa8] sm:$0xff]
    %v119 = vld [vmem:[#allocation3 + $0xb0] sm:$0xff]
    %v120 = vld [vmem:[#allocation3 + $0xb8] sm:$0xff]
    %v121 = vld [vmem:[#allocation3 + $0xc0] sm:$0xff]
    %v122 = vld [vmem:[#allocation3 + $0xc8] sm:$0xff]
    %v123 = vld [vmem:[#allocation3 + $0xd0] sm:$0xff]
    %v124 = vld [vmem:[#allocation3 + $0xd8] sm:$0xff]
    %v125 = vld [vmem:[#allocation3 + $0xe0] sm:$0xff]
    %v126 = vld [vmem:[#allocation3 + $0xe8] sm:$0xff]
    %v127 = vld [vmem:[#allocation3 + $0xf0] sm:$0xff]
    %v128 = vld [vmem:[#allocation3 + $0xf8] sm:$0xff]
    %v129 = vld [vmem:[#allocation6] sm:$0xff]
    %v130 = vld [vmem:[#allocation6 + $0x8] sm:$0xff]
    %v131 = vld [vmem:[#allocation6 + $0x10] sm:$0xff]
    %v132 = vld [vmem:[#allocation6 + $0x18] sm:$0xff]
    %v133 = vld [vmem:[#allocation6 + $0x20] sm:$0xff]
    %v134 = vld [vmem:[#allocation6 + $0x28] sm:$0xff]
    %v135 = vld [vmem:[#allocation6 + $0x30] sm:$0xff]
    %v136 = vld [vmem:[#allocation6 + $0x38] sm:$0xff]
    %v137 = vld [vmem:[#allocation6 + $0x40] sm:$0xff]
    %v138 = vld [vmem:[#allocation6 + $0x48] sm:$0xff]
    %v139 = vld [vmem:[#allocation6 + $0x50] sm:$0xff]
    %v140 = vld [vmem:[#allocation6 + $0x58] sm:$0xff]
    %v141 = vld [vmem:[#allocation6 + $0x60] sm:$0xff]
    %v142 = vld [vmem:[#allocation6 + $0x68] sm:$0xff]
    %v143 = vld [vmem:[#allocation6 + $0x70] sm:$0xff]
    %v144 = vld [vmem:[#allocation6 + $0x78] sm:$0xff]
    %v145 = vld [vmem:[#allocation6 + $0x80] sm:$0xff]
    %v146 = vld [vmem:[#allocation6 + $0x88] sm:$0xff]
    %v147 = vld [vmem:[#allocation6 + $0x90] sm:$0xff]
    %v148 = vld [vmem:[#allocation6 + $0x98] sm:$0xff]
    %v149 = vld [vmem:[#allocation6 + $0xa0] sm:$0xff]
    %v150 = vld [vmem:[#allocation6 + $0xa8] sm:$0xff]
    %v151 = vld [vmem:[#allocation6 + $0xb0] sm:$0xff]
    %v152 = vld [vmem:[#allocation6 + $0xb8] sm:$0xff]
    %v153 = vld [vmem:[#allocation6 + $0xc0] sm:$0xff]
    %v154 = vld [vmem:[#allocation6 + $0xc8] sm:$0xff]
    %v155 = vld [vmem:[#allocation6 + $0xd0] sm:$0xff]
    %v156 = vld [vmem:[#allocation6 + $0xd8] sm:$0xff]
    %v157 = vld [vmem:[#allocation6 + $0xe0] sm:$0xff]
    %v158 = vld [vmem:[#allocation6 + $0xe8] sm:$0xff]
    %v159 = vld [vmem:[#allocation6 + $0xf0] sm:$0xff]
    %v160 = vld [vmem:[#allocation6 + $0xf8] sm:$0xff]
    %v161 = vld [vmem:[#allocation8] sm:$0xff]
    %v162 = vld [vmem:[#allocation8 + $0x8] sm:$0xff]
    %v163 = vld [vmem:[#allocation8 + $0x10] sm:$0xff]
    %v164 = vld [vmem:[#allocation8 + $0x18] sm:$0xff]
    %v165 = vld [vmem:[#allocation8 + $0x20] sm:$0xff]
    %v166 = vld [vmem:[#allocation8 + $0x28] sm:$0xff]
    %v167 = vld [vmem:[#allocation8 + $0x30] sm:$0xff]
    %v168 = vld [vmem:[#allocation8 + $0x38] sm:$0xff]
    %v169 = vld [vmem:[#allocation8 + $0x40] sm:$0xff]
    %v170 = vld [vmem:[#allocation8 + $0x48] sm:$0xff]
    %v171 = vld [vmem:[#allocation8 + $0x50] sm:$0xff]
    %v172 = vld [vmem:[#allocation8 + $0x58] sm:$0xff]
    %v173 = vld [vmem:[#allocation8 + $0x60] sm:$0xff]
    %v174 = vld [vmem:[#allocation8 + $0x68] sm:$0xff]
    %v175 = vld [vmem:[#allocation8 + $0x70] sm:$0xff]
    %v176 = vld [vmem:[#allocation8 + $0x78] sm:$0xff]
    %v177 = vld [vmem:[#allocation8 + $0x80] sm:$0xff]
    %v178 = vld [vmem:[#allocation8 + $0x88] sm:$0xff]
    %v179 = vld [vmem:[#allocation8 + $0x90] sm:$0xff]
    %v180 = vld [vmem:[#allocation8 + $0x98] sm:$0xff]
    %v181 = vld [vmem:[#allocation8 + $0xa0] sm:$0xff]
    %v182 = vld [vmem:[#allocation8 + $0xa8] sm:$0xff]
    %v183 = vld [vmem:[#allocation8 + $0xb0] sm:$0xff]
    %v184 = vld [vmem:[#allocation8 + $0xb8] sm:$0xff]
    %v185 = vld [vmem:[#allocation8 + $0xc0] sm:$0xff]
    %v186 = vld [vmem:[#allocation8 + $0xc8] sm:$0xff]
    %v187 = vld [vmem:[#allocation8 + $0xd0] sm:$0xff]
    %v188 = vld [vmem:[#allocation8 + $0xd8] sm:$0xff]
    %v189 = vld [vmem:[#allocation8 + $0xe0] sm:$0xff]
    %v190 = vld [vmem:[#allocation8 + $0xe8] sm:$0xff]
    %v191 = vld [vmem:[#allocation8 + $0xf0] sm:$0xff]
    %v192 = vld [vmem:[#allocation8 + $0xf8] sm:$0xff]
    %v193 = vsub.f32 %v129, %v97
    %v194 = vsub.f32 %v130, %v98
    %v195 = vsub.f32 %v131, %v99
    %v196 = vsub.f32 %v132, %v100
    %v197 = vsub.f32 %v133, %v101
    %v198 = vsub.f32 %v134, %v102
    %v199 = vsub.f32 %v135, %v103
    %v200 = vsub.f32 %v136, %v104
    %v201 = vsub.f32 %v137, %v105
    %v202 = vsub.f32 %v138, %v106
    %v203 = vsub.f32 %v139, %v107
    %v204 = vsub.f32 %v140, %v108
    %v205 = vsub.f32 %v141, %v109
    %v206 = vsub.f32 %v142, %v110
    %v207 = vsub.f32 %v143, %v111
    %v208 = vsub.f32 %v144, %v112
    %v209 = vsub.f32 %v145, %v113
    %v210 = vsub.f32 %v146, %v114
    %v211 = vsub.f32 %v147, %v115
    %v212 = vsub.f32 %v148, %v116
    %v213 = vsub.f32 %v149, %v117
    %v214 = vsub.f32 %v150, %v118
    %v215 = vsub.f32 %v151, %v119
    %v216 = vsub.f32 %v152, %v120
    %v217 = vsub.f32 %v153, %v121
    %v218 = vsub.f32 %v154, %v122
    %v219 = vsub.f32 %v155, %v123
    %v220 = vsub.f32 %v156, %v124
    %v221 = vsub.f32 %v157, %v125
    %v222 = vsub.f32 %v158, %v126
    %v223 = vsub.f32 %v159, %v127
    %v224 = vsub.f32 %v160, %v128
    %v225 = vand.u32 2147483647, %v193
    %v226 = vand.u32 2147483647, %v194
    %v227 = vand.u32 2147483647, %v195
    %v228 = vand.u32 2147483647, %v196
    %v229 = vand.u32 2147483647, %v197
    %v230 = vand.u32 2147483647, %v198
    %v231 = vand.u32 2147483647, %v199
    %v232 = vand.u32 2147483647, %v200
    %v233 = vand.u32 2147483647, %v201
    %v234 = vand.u32 2147483647, %v202
    %v235 = vand.u32 2147483647, %v203
    %v236 = vand.u32 2147483647, %v204
    %v237 = vand.u32 2147483647, %v205
    %v238 = vand.u32 2147483647, %v206
    %v239 = vand.u32 2147483647, %v207
    %v240 = vand.u32 2147483647, %v208
    %v241 = vand.u32 2147483647, %v209
    %v242 = vand.u32 2147483647, %v210
    %v243 = vand.u32 2147483647, %v211
    %v244 = vand.u32 2147483647, %v212
    %v245 = vand.u32 2147483647, %v213
    %v246 = vand.u32 2147483647, %v214
    %v247 = vand.u32 2147483647, %v215
    %v248 = vand.u32 2147483647, %v216
    %v249 = vand.u32 2147483647, %v217
    %v250 = vand.u32 2147483647, %v218
    %v251 = vand.u32 2147483647, %v219
    %v252 = vand.u32 2147483647, %v220
    %v253 = vand.u32 2147483647, %v221
    %v254 = vand.u32 2147483647, %v222
    %v255 = vand.u32 2147483647, %v223
    %v256 = vand.u32 2147483647, %v224
    %v257 = vand.u32 2147483647, %v161
    %v258 = vand.u32 2147483647, %v162
    %v259 = vand.u32 2147483647, %v163
    %v260 = vand.u32 2147483647, %v164
    %v261 = vand.u32 2147483647, %v165
    %v262 = vand.u32 2147483647, %v166
    %v263 = vand.u32 2147483647, %v167
    %v264 = vand.u32 2147483647, %v168
    %v265 = vand.u32 2147483647, %v169
    %v266 = vand.u32 2147483647, %v170
    %v267 = vand.u32 2147483647, %v171
    %v268 = vand.u32 2147483647, %v172
    %v269 = vand.u32 2147483647, %v173
    %v270 = vand.u32 2147483647, %v174
    %v271 = vand.u32 2147483647, %v175
    %v272 = vand.u32 2147483647, %v176
    %v273 = vand.u32 2147483647, %v177
    %v274 = vand.u32 2147483647, %v178
    %v275 = vand.u32 2147483647, %v179
    %v276 = vand.u32 2147483647, %v180
    %v277 = vand.u32 2147483647, %v181
    %v278 = vand.u32 2147483647, %v182
    %v279 = vand.u32 2147483647, %v183
    %v280 = vand.u32 2147483647, %v184
    %v281 = vand.u32 2147483647, %v185
    %v282 = vand.u32 2147483647, %v186
    %v283 = vand.u32 2147483647, %v187
    %v284 = vand.u32 2147483647, %v188
    %v285 = vand.u32 2147483647, %v189
    %v286 = vand.u32 2147483647, %v190
    %v287 = vand.u32 2147483647, %v191
    %v288 = vand.u32 2147483647, %v192
    %v289 = vmax.f32 %v225, %v257
    %v290 = vmax.f32 %v226, %v258
    %v291 = vmax.f32 %v227, %v259
    %v292 = vmax.f32 %v228, %v260
    %v293 = vmax.f32 %v229, %v261
    %v294 = vmax.f32 %v230, %v262
    %v295 = vmax.f32 %v231, %v263
    %v296 = vmax.f32 %v232, %v264
    %v297 = vmax.f32 %v233, %v265
    %v298 = vmax.f32 %v234, %v266
    %v299 = vmax.f32 %v235, %v267
    %v300 = vmax.f32 %v236, %v268
    %v301 = vmax.f32 %v237, %v269
    %v302 = vmax.f32 %v238, %v270
    %v303 = vmax.f32 %v239, %v271
    %v304 = vmax.f32 %v240, %v272
    %v305 = vmax.f32 %v241, %v273
    %v306 = vmax.f32 %v242, %v274
    %v307 = vmax.f32 %v243, %v275
    %v308 = vmax.f32 %v244, %v276
    %v309 = vmax.f32 %v245, %v277
    %v310 = vmax.f32 %v246, %v278
    %v311 = vmax.f32 %v247, %v279
    %v312 = vmax.f32 %v248, %v280
    %v313 = vmax.f32 %v249, %v281
    %v314 = vmax.f32 %v250, %v282
    %v315 = vmax.f32 %v251, %v283
    %v316 = vmax.f32 %v252, %v284
    %v317 = vmax.f32 %v253, %v285
    %v318 = vmax.f32 %v254, %v286
    %v319 = vmax.f32 %v255, %v287
    %v320 = vmax.f32 %v256, %v288
    %v321 = vmul.f32 %v161, 0.8
    %v322 = vmul.f32 %v162, 0.8
    %v323 = vmul.f32 %v163, 0.8
    %v324 = vmul.f32 %v164, 0.8
    %v325 = vmul.f32 %v165, 0.8
    %v326 = vmul.f32 %v166, 0.8
    %v327 = vmul.f32 %v167, 0.8
    %v328 = vmul.f32 %v168, 0.8
    %v329 = vmul.f32 %v169, 0.8
    %v330 = vmul.f32 %v170, 0.8
    %v331 = vmul.f32 %v171, 0.8
    %v332 = vmul.f32 %v172, 0.8
    %v333 = vmul.f32 %v173, 0.8
    %v334 = vmul.f32 %v174, 0.8
    %v335 = vmul.f32 %v175, 0.8
    %v336 = vmul.f32 %v176, 0.8
    %v337 = vmul.f32 %v177, 0.8
    %v338 = vmul.f32 %v178, 0.8
    %v339 = vmul.f32 %v179, 0.8
    %v340 = vmul.f32 %v180, 0.8
    %v341 = vmul.f32 %v181, 0.8
    %v342 = vmul.f32 %v182, 0.8
    %v343 = vmul.f32 %v183, 0.8
    %v344 = vmul.f32 %v184, 0.8
    %v345 = vmul.f32 %v185, 0.8
    %v346 = vmul.f32 %v186, 0.8
    %v347 = vmul.f32 %v187, 0.8
    %v348 = vmul.f32 %v188, 0.8
    %v349 = vmul.f32 %v189, 0.8
    %v350 = vmul.f32 %v190, 0.8
    %v351 = vmul.f32 %v191, 0.8
    %v352 = vmul.f32 %v192, 0.8
    %v353 = vsub.f32 %v289, %v321
    %v354 = vsub.f32 %v290, %v322
    %v355 = vsub.f32 %v291, %v323
    %v356 = vsub.f32 %v292, %v324
    %v357 = vsub.f32 %v293, %v325
    %v358 = vsub.f32 %v294, %v326
    %v359 = vsub.f32 %v295, %v327
    %v360 = vsub.f32 %v296, %v328
    %v361 = vsub.f32 %v297, %v329
    %v362 = vsub.f32 %v298, %v330
    %v363 = vsub.f32 %v299, %v331
    %v364 = vsub.f32 %v300, %v332
    %v365 = vsub.f32 %v301, %v333
    %v366 = vsub.f32 %v302, %v334
    %v367 = vsub.f32 %v303, %v335
    %v368 = vsub.f32 %v304, %v336
    %v369 = vsub.f32 %v305, %v337
    %v370 = vsub.f32 %v306, %v338
    %v371 = vsub.f32 %v307, %v339
    %v372 = vsub.f32 %v308, %v340
    %v373 = vsub.f32 %v309, %v341
    %v374 = vsub.f32 %v310, %v342
    %v375 = vsub.f32 %v311, %v343
    %v376 = vsub.f32 %v312, %v344
    %v377 = vsub.f32 %v313, %v345
    %v378 = vsub.f32 %v314, %v346
    %v379 = vsub.f32 %v315, %v347
    %v380 = vsub.f32 %v316, %v348
    %v381 = vsub.f32 %v317, %v349
    %v382 = vsub.f32 %v318, %v350
    %v383 = vsub.f32 %v319, %v351
    %v384 = vsub.f32 %v320, %v352
    %v385 = vmul.f32 %v193, %v193
    %v386 = vmul.f32 %v194, %v194
    %v387 = vmul.f32 %v195, %v195
    %v388 = vmul.f32 %v196, %v196
    %v389 = vmul.f32 %v197, %v197
    %v390 = vmul.f32 %v198, %v198
    %v391 = vmul.f32 %v199, %v199
    %v392 = vmul.f32 %v200, %v200
    %v393 = vmul.f32 %v201, %v201
    %v394 = vmul.f32 %v202, %v202
    %v395 = vmul.f32 %v203, %v203
    %v396 = vmul.f32 %v204, %v204
    %v397 = vmul.f32 %v205, %v205
    %v398 = vmul.f32 %v206, %v206
    %v399 = vmul.f32 %v207, %v207
    %v400 = vmul.f32 %v208, %v208
    %v401 = vmul.f32 %v209, %v209
    %v402 = vmul.f32 %v210, %v210
    %v403 = vmul.f32 %v211, %v211
    %v404 = vmul.f32 %v212, %v212
    %v405 = vmul.f32 %v213, %v213
    %v406 = vmul.f32 %v214, %v214
    %v407 = vmul.f32 %v215, %v215
    %v408 = vmul.f32 %v216, %v216
    %v409 = vmul.f32 %v217, %v217
    %v410 = vmul.f32 %v218, %v218
    %v411 = vmul.f32 %v219, %v219
    %v412 = vmul.f32 %v220, %v220
    %v413 = vmul.f32 %v221, %v221
    %v414 = vmul.f32 %v222, %v222
    %v415 = vmul.f32 %v223, %v223
    %v416 = vmul.f32 %v224, %v224
    %v417 = vmul.f32 %v385, 0.8
    %v418 = vmul.f32 %v386, 0.8
    %v419 = vmul.f32 %v387, 0.8
    %v420 = vmul.f32 %v388, 0.8
    %v421 = vmul.f32 %v389, 0.8
    %v422 = vmul.f32 %v390, 0.8
    %v423 = vmul.f32 %v391, 0.8
    %v424 = vmul.f32 %v392, 0.8
    %v425 = vmul.f32 %v393, 0.8
    %v426 = vmul.f32 %v394, 0.8
    %v427 = vmul.f32 %v395, 0.8
    %v428 = vmul.f32 %v396, 0.8
    %v429 = vmul.f32 %v397, 0.8
    %v430 = vmul.f32 %v398, 0.8
    %v431 = vmul.f32 %v399, 0.8
    %v432 = vmul.f32 %v400, 0.8
    %v433 = vmul.f32 %v401, 0.8
    %v434 = vmul.f32 %v402, 0.8
    %v435 = vmul.f32 %v403, 0.8
    %v436 = vmul.f32 %v404, 0.8
    %v437 = vmul.f32 %v405, 0.8
    %v438 = vmul.f32 %v406, 0.8
    %v439 = vmul.f32 %v407, 0.8
    %v440 = vmul.f32 %v408, 0.8
    %v441 = vmul.f32 %v409, 0.8
    %v442 = vmul.f32 %v410, 0.8
    %v443 = vmul.f32 %v411, 0.8
    %v444 = vmul.f32 %v412, 0.8
    %v445 = vmul.f32 %v413, 0.8
    %v446 = vmul.f32 %v414, 0.8
    %v447 = vmul.f32 %v415, 0.8
    %v448 = vmul.f32 %v416, 0.8
    %v449 = vadd.f32 %v353, %v417
    %v450 = vadd.f32 %v354, %v418
    %v451 = vadd.f32 %v355, %v419
    %v452 = vadd.f32 %v356, %v420
    %v453 = vadd.f32 %v357, %v421
    %v454 = vadd.f32 %v358, %v422
    %v455 = vadd.f32 %v359, %v423
    %v456 = vadd.f32 %v360, %v424
    %v457 = vadd.f32 %v361, %v425
    %v458 = vadd.f32 %v362, %v426
    %v459 = vadd.f32 %v363, %v427
    %v460 = vadd.f32 %v364, %v428
    %v461 = vadd.f32 %v365, %v429
    %v462 = vadd.f32 %v366, %v430
    %v463 = vadd.f32 %v367, %v431
    %v464 = vadd.f32 %v368, %v432
    %v465 = vadd.f32 %v369, %v433
    %v466 = vadd.f32 %v370, %v434
    %v467 = vadd.f32 %v371, %v435
    %v468 = vadd.f32 %v372, %v436
    %v469 = vadd.f32 %v373, %v437
    %v470 = vadd.f32 %v374, %v438
    %v471 = vadd.f32 %v375, %v439
    %v472 = vadd.f32 %v376, %v440
    %v473 = vadd.f32 %v377, %v441
    %v474 = vadd.f32 %v378, %v442
    %v475 = vadd.f32 %v379, %v443
    %v476 = vadd.f32 %v380, %v444
    %v477 = vadd.f32 %v381, %v445
    %v478 = vadd.f32 %v382, %v446
    %v479 = vadd.f32 %v383, %v447
    %v480 = vadd.f32 %v384, %v448
    %v481 = vsub.f32 %v97, %v161
    %v482 = vsub.f32 %v98, %v162
    %v483 = vsub.f32 %v99, %v163
    %v484 = vsub.f32 %v100, %v164
    %v485 = vsub.f32 %v101, %v165
    %v486 = vsub.f32 %v102, %v166
    %v487 = vsub.f32 %v103, %v167
    %v488 = vsub.f32 %v104, %v168
    %v489 = vsub.f32 %v105, %v169
    %v490 = vsub.f32 %v106, %v170
    %v491 = vsub.f32 %v107, %v171
    %v492 = vsub.f32 %v108, %v172
    %v493 = vsub.f32 %v109, %v173
    %v494 = vsub.f32 %v110, %v174
    %v495 = vsub.f32 %v111, %v175
    %v496 = vsub.f32 %v112, %v176
    %v497 = vsub.f32 %v113, %v177
    %v498 = vsub.f32 %v114, %v178
    %v499 = vsub.f32 %v115, %v179
    %v500 = vsub.f32 %v116, %v180
    %v501 = vsub.f32 %v117, %v181
    %v502 = vsub.f32 %v118, %v182
    %v503 = vsub.f32 %v119, %v183
    %v504 = vsub.f32 %v120, %v184
    %v505 = vsub.f32 %v121, %v185
    %v506 = vsub.f32 %v122, %v186
    %v507 = vsub.f32 %v123, %v187
    %v508 = vsub.f32 %v124, %v188
    %v509 = vsub.f32 %v125, %v189
    %v510 = vsub.f32 %v126, %v190
    %v511 = vsub.f32 %v127, %v191
    %v512 = vsub.f32 %v128, %v192
    %v513 = vand.u32 2147483647, %v481
    %v514 = vand.u32 2147483647, %v482
    %v515 = vand.u32 2147483647, %v483
    %v516 = vand.u32 2147483647, %v484
    %v517 = vand.u32 2147483647, %v485
    %v518 = vand.u32 2147483647, %v486
    %v519 = vand.u32 2147483647, %v487
    %v520 = vand.u32 2147483647, %v488
    %v521 = vand.u32 2147483647, %v489
    %v522 = vand.u32 2147483647, %v490
    %v523 = vand.u32 2147483647, %v491
    %v524 = vand.u32 2147483647, %v492
    %v525 = vand.u32 2147483647, %v493
    %v526 = vand.u32 2147483647, %v494
    %v527 = vand.u32 2147483647, %v495
    %v528 = vand.u32 2147483647, %v496
    %v529 = vand.u32 2147483647, %v497
    %v530 = vand.u32 2147483647, %v498
    %v531 = vand.u32 2147483647, %v499
    %v532 = vand.u32 2147483647, %v500
    %v533 = vand.u32 2147483647, %v501
    %v534 = vand.u32 2147483647, %v502
    %v535 = vand.u32 2147483647, %v503
    %v536 = vand.u32 2147483647, %v504
    %v537 = vand.u32 2147483647, %v505
    %v538 = vand.u32 2147483647, %v506
    %v539 = vand.u32 2147483647, %v507
    %v540 = vand.u32 2147483647, %v508
    %v541 = vand.u32 2147483647, %v509
    %v542 = vand.u32 2147483647, %v510
    %v543 = vand.u32 2147483647, %v511
    %v544 = vand.u32 2147483647, %v512
    %v545 = vmul.f32 %v513, 0.1
    %v546 = vmul.f32 %v514, 0.1
    %v547 = vmul.f32 %v515, 0.1
    %v548 = vmul.f32 %v516, 0.1
    %v549 = vmul.f32 %v517, 0.1
    %v550 = vmul.f32 %v518, 0.1
    %v551 = vmul.f32 %v519, 0.1
    %v552 = vmul.f32 %v520, 0.1
    %v553 = vmul.f32 %v521, 0.1
    %v554 = vmul.f32 %v522, 0.1
    %v555 = vmul.f32 %v523, 0.1
    %v556 = vmul.f32 %v524, 0.1
    %v557 = vmul.f32 %v525, 0.1
    %v558 = vmul.f32 %v526, 0.1
    %v559 = vmul.f32 %v527, 0.1
    %v560 = vmul.f32 %v528, 0.1
    %v561 = vmul.f32 %v529, 0.1
    %v562 = vmul.f32 %v530, 0.1
    %v563 = vmul.f32 %v531, 0.1
    %v564 = vmul.f32 %v532, 0.1
    %v565 = vmul.f32 %v533, 0.1
    %v566 = vmul.f32 %v534, 0.1
    %v567 = vmul.f32 %v535, 0.1
    %v568 = vmul.f32 %v536, 0.1
    %v569 = vmul.f32 %v537, 0.1
    %v570 = vmul.f32 %v538, 0.1
    %v571 = vmul.f32 %v539, 0.1
    %v572 = vmul.f32 %v540, 0.1
    %v573 = vmul.f32 %v541, 0.1
    %v574 = vmul.f32 %v542, 0.1
    %v575 = vmul.f32 %v543, 0.1
    %v576 = vmul.f32 %v544, 0.1
    %v577 = vadd.f32 %v449, %v545
    %v578 = vadd.f32 %v450, %v546
    %v579 = vadd.f32 %v451, %v547
    %v580 = vadd.f32 %v452, %v548
    %v581 = vadd.f32 %v453, %v549
    %v582 = vadd.f32 %v454, %v550
    %v583 = vadd.f32 %v455, %v551
    %v584 = vadd.f32 %v456, %v552
    %v585 = vadd.f32 %v457, %v553
    %v586 = vadd.f32 %v458, %v554
    %v587 = vadd.f32 %v459, %v555
    %v588 = vadd.f32 %v460, %v556
    %v589 = vadd.f32 %v461, %v557
    %v590 = vadd.f32 %v462, %v558
    %v591 = vadd.f32 %v463, %v559
    %v592 = vadd.f32 %v464, %v560
    %v593 = vadd.f32 %v465, %v561
    %v594 = vadd.f32 %v466, %v562
    %v595 = vadd.f32 %v467, %v563
    %v596 = vadd.f32 %v468, %v564
    %v597 = vadd.f32 %v469, %v565
    %v598 = vadd.f32 %v470, %v566
    %v599 = vadd.f32 %v471, %v567
    %v600 = vadd.f32 %v472, %v568
    %v601 = vadd.f32 %v473, %v569
    %v602 = vadd.f32 %v474, %v570
    %v603 = vadd.f32 %v475, %v571
    %v604 = vadd.f32 %v476, %v572
    %v605 = vadd.f32 %v477, %v573
    %v606 = vadd.f32 %v478, %v574
    %v607 = vadd.f32 %v479, %v575
    %v608 = vadd.f32 %v480, %v576
    %v609 = vld [vmem:[#allocation2] sm:$0xff]
    %v610 = vadd.f32 %v577, %v578
    %v611 = vadd.f32 %v610, %v579
    %v612 = vadd.f32 %v611, %v580
    %v613 = vadd.f32 %v612, %v581
    %v614 = vadd.f32 %v613, %v582
    %v615 = vadd.f32 %v614, %v583
    %v616 = vadd.f32 %v615, %v584
    %v617 = vadd.f32 %v616, %v585
    %v618 = vadd.f32 %v617, %v586
    %v619 = vadd.f32 %v618, %v587
    %v620 = vadd.f32 %v619, %v588
    %v621 = vadd.f32 %v620, %v589
    %v622 = vadd.f32 %v621, %v590
    %v623 = vadd.f32 %v622, %v591
    %v624 = vadd.f32 %v623, %v592
    %v625 = vadd.f32 %v624, %v593
    %v626 = vadd.f32 %v625, %v594
    %v627 = vadd.f32 %v626, %v595
    %v628 = vadd.f32 %v627, %v596
    %v629 = vadd.f32 %v628, %v597
    %v630 = vadd.f32 %v629, %v598
    %v631 = vadd.f32 %v630, %v599
    %v632 = vadd.f32 %v631, %v600
    %v633 = vadd.f32 %v632, %v601
    %v634 = vadd.f32 %v633, %v602
    %v635 = vadd.f32 %v634, %v603
    %v636 = vadd.f32 %v635, %v604
    %v637 = vadd.f32 %v636, %v605
    %v638 = vadd.f32 %v637, %v606
    %v639 = vadd.f32 %v638, %v607
    %v640 = vadd.f32 %v639, %v608
    %v641 = vadd.f32 %v609, %v640
    %642 = vst [vmem:[#allocation2] sm:$0xff] %v641
    // Predicated region
    $region30: #{tpu_custom_call.1} parent=1 // pred_check
      %p643 = pneg %p92
    $region31: #{tpu_custom_call.1} parent=1 // pred_check_branch
      %645 = sbr.rel (%p643) target = $region33
    $region32: #{tpu_custom_call.1} parent=1 // pred_region
      %v646 = vld [vmem:[#allocation2] sm:$0xff]
      %647 = vst [vmem:[#allocation9] sm:$0xff] %v646
    $region33: #{tpu_custom_call.1} parent=1 // pred_fallthru
      _
    // Predicated region
    $region34: #{tpu_custom_call.1} parent=1 // pred_check
      _
    $region35: #{tpu_custom_call.1} parent=1 // pred_check_branch
      %649 = sbr.rel (0) target = $region37
    $region36: #{tpu_custom_call.1} parent=1 // pred_region
      %651 = vsyncadd [#allocation5], 0
      %s653 = sshll.u32 [#allocation9], 4
      %s654 = int_to_ptr.vmem [resolvable:$true] %s653
      %s655 = sshll.u32 %s3, 4
      %s656 = int_to_ptr.hbm [resolvable:$true] %s655
      %658 = dma.vmem_to_hbm [thread:$0]  %s654, 128, %s656, [#allocation5]
    $region37: #{tpu_custom_call.1} parent=1 // pred_fallthru
      _
    // Predicated region
    $region38: #{tpu_custom_call.1} parent=1 // pred_check
      _
    $region39: #{tpu_custom_call.1} parent=1 // pred_check_branch
      %660 = sbr.rel (0) target = $region41
    $region40: #{tpu_custom_call.1} parent=1 // pred_region
      %662 = dma.done [#allocation5], 128
    $region41: #{tpu_custom_call.1} parent=1 // pred_fallthru
      _
    %663 = vsyncpa [#allocation4], 1
    %664 = vsyncpa [#allocation7], 1
    %665 = vsyncpa [#allocation5], 1

</llo_original>
